<compile_context>
chip_gen: v5e
topology: v5e:2x2
jax: 0.10.0
libtpu: 0.0.40
codegen_flags: <defaults>
</compile_context>

<pallas_src>
import functools

import jax
import jax.numpy as jnp
from jax import lax
from jax.experimental import pallas as pl
from jax.experimental.pallas import tpu as pltpu

TAU = 2.0 / 3.0     # gumbel_softmax temperature (argmax-invariant for hard fwd)
BN_EPS = 1e-5       # PyTorch BatchNorm1d default eps
HIDDEN = 16         # fc1 output / BN feature count


def _round_up(x, m):
    return ((x + m - 1) // m) * m


def _sublane_multiple(itemsize):
    # 32-bit rows use 8 sublanes; sub-32-bit dtypes pack 2x/4x deeper.
    return 8 * max(4 // max(int(itemsize), 1), 1)


def _padded_block_bytes(b, c, tile_hw, itemsize):
    """VMEM bytes of one (B, C, tile_hw) block after sublane/lane padding."""
    c_pad = _round_up(c, _sublane_multiple(itemsize))
    lanes = _round_up(tile_hw, 128)
    return b * c_pad * lanes * int(itemsize)


def _vmem_capacity_bytes():
    try:
        return int(pltpu.get_tpu_info().vmem_capacity_bytes)
    except Exception:
        return 64 << 20          # conservative fallback = v7x per-TC VMEM


def _pick_tile_hw(hw, b, c, itemsize, target_bytes):
    """Largest lane-dense tile (multiple of 128) whose PADDED size <= target."""
    c_pad = _round_up(c, _sublane_multiple(itemsize))
    per_col = b * c_pad * int(itemsize)          # padded bytes per HW position
    tile = int(target_bytes) // max(per_col, 1)
    tile = max((tile // 128) * 128, 128)
    return hw if tile >= hw else tile


# ---------------------------------------------------------------------------
# Kernel 1: streaming pooled-sum over HW (the HBM-bound part).
# Grid = (ncores "parallel", steps_per_core "arbitrary"); each core
# accumulates its partial pooled sum into its own (1, B, C) output block.
# ---------------------------------------------------------------------------
def _pool_kernel(hw_total, tile_hw, steps_per_core, mask_needed,
                 x_ref, part_ref):
    # x_ref:    (B, C, tile_hw)  native dtype, HW on lanes
    # part_ref: (1, B, C)        f32 per-core partial pooled sum (resident)
    p = pl.program_id(0)
    s = pl.program_id(1)
    t = p * steps_per_core + s               # raw global tile index

    @pl.when(s == 0)
    def _():
        part_ref[...] = jnp.zeros_like(part_ref)

    x = x_ref[...].astype(jnp.float32)       # cast per tile, in-kernel

    def _add(v):
        part_ref[...] += jnp.sum(v, axis=-1)[None]      # (1, B, C)

    if not mask_needed:                      # static: HW divides evenly
        _add(x)
    else:
        is_full = (t + 1) * tile_hw <= hw_total

        @pl.when(is_full)                    # full tiles: plain sum
        def _():
            _add(x)

        @pl.when(jnp.logical_not(is_full))   # boundary / overhang tiles only
        def _():
            lane = lax.broadcasted_iota(jnp.int32, x.shape, 2)
            _add(jnp.where(t * tile_hw + lane < hw_total, x, 0.0))


# ---------------------------------------------------------------------------
# Kernel 2: microsecond-scale epilogue. Combines per-core partials, then
# fc1 -> BatchNorm1d (batch stats) -> relu -> fc2 -> exp -> hard gumbel.
# Single invocation, everything resident in VMEM.
# ---------------------------------------------------------------------------
def _epilogue_kernel(hw_total, part_ref, w1_ref, b1_ref, gamma_ref, beta_ref,
                     w2_ref, b2_ref, g_ref, out_ref):
    # AdaptiveAvgPool2d((1,1)) + squeeze
    pooled = jnp.sum(part_ref[...], axis=0) * (1.0 / hw_total)       # (B, C)

    # fc1
    h = jnp.dot(pooled, w1_ref[...],
                preferred_element_type=jnp.float32) + b1_ref[...]

    # BatchNorm1d, training mode: batch mean / biased batch variance
    mu = jnp.mean(h, axis=0, keepdims=True)
    var = jnp.mean((h - mu) ** 2, axis=0, keepdims=True)
    h = (h - mu) * lax.rsqrt(var + BN_EPS) * gamma_ref[...] + beta_ref[...]

    # ReLU
    h = jnp.maximum(h, 0.0)

    # fc2
    logits = jnp.dot(h, w2_ref[...],
                     preferred_element_type=jnp.float32) + b2_ref[...]

    # pi = exp(x); gumbel_softmax(pi, tau, hard=True): hard forward value is
    # the one-hot at argmax((pi + g) / tau); positive 1/tau never changes the
    # argmax, so it is dropped.
    y = jnp.exp(logits) + g_ref[...]
    b, o = y.shape
    col = lax.broadcasted_iota(jnp.int32, (b, o), 1)
    m = jnp.max(y, axis=-1, keepdims=True)
    # first occurrence of the max (matches torch argmax tie-breaking)
    first_idx = jnp.min(jnp.where(y == m, col, o), axis=-1, keepdims=True)
    out_ref[...] = (col == first_idx).astype(out_ref.dtype)


def gate_forward(x, params, gumbel_noise, *, tile_hw=None):
    """x: (B, C, H, W) NCHW (PyTorch layout). Returns hard one-hot (B, out) f32."""
    B, C, H, W = x.shape
    HW = H * W
    w1, b1, gamma, beta, w2, b2 = params
    O = w2.shape[1]

    # Native layout: merging H,W of NCHW is a FREE reshape (no HBM round trip).
    # HW sits on the lane axis -> lane-dense VMEM tiles, fully contiguous DMA.
    x3 = x.reshape(B, C, HW)
    itemsize = x3.dtype.itemsize

    cap = _vmem_capacity_bytes()
    # Working-set budget: 2x double-buffered tile + f32 cast temp + headroom,
    # kept well below the physical per-core VMEM (64 MiB on v7x).
    budget = min(cap - (8 << 20), 48 << 20)
    cast_factor = 0.0 if x3.dtype == jnp.float32 else 4.0 / itemsize
    target = int(min(12 << 20, budget / (2.0 + cast_factor)))

    if tile_hw is None:
        tile_hw = _pick_tile_hw(HW, B, C, itemsize, target)
    elif tile_hw < HW:
        tile_hw = min(HW, _round_up(int(tile_hw), 128))   # lane-dense tiles
    else:
        tile_hw = HW

    n_tiles = pl.cdiv(HW, tile_hw)
    ncores = 2 if n_tiles >= 2 else 1          # split stream across TCs (v7x)
    steps_per_core = pl.cdiv(n_tiles, ncores)
    mask_needed = (HW % tile_hw != 0) or (steps_per_core * ncores != n_tiles)

    if steps_per_core * ncores == n_tiles:
        x_map = lambda p, s: (0, 0, p * steps_per_core + s)
    else:
        last = n_tiles - 1                     # clamp overhang steps (masked in-kernel)
        x_map = lambda p, s: (0, 0, jnp.minimum(p * steps_per_core + s, last))

    blk = _padded_block_bytes(B, C, tile_hw, itemsize)
    tmp = 0 if x3.dtype == jnp.float32 else _padded_block_bytes(B, C, tile_hw, 4)
    vmem_limit = int(min(max(2 * blk + tmp + (4 << 20), 16 << 20),
                         cap - (8 << 20)))

    partials = pl.pallas_call(
        functools.partial(_pool_kernel, HW, tile_hw, steps_per_core, mask_needed),
        out_shape=jax.ShapeDtypeStruct((ncores, B, C), jnp.float32),
        grid_spec=pltpu.PrefetchScalarGridSpec(
            num_scalar_prefetch=0,
            grid=(ncores, steps_per_core),
            in_specs=[pl.BlockSpec((B, C, tile_hw), x_map)],
            out_specs=pl.BlockSpec((1, B, C), lambda p, s: (p, 0, 0)),
        ),
        compiler_params=pltpu.CompilerParams(
            dimension_semantics=("parallel", "arbitrary"),
            vmem_limit_bytes=vmem_limit,
        ),
    )(x3)

    # Tiny epilogue call: whole (micro-sized) arrays resident in VMEM.
    return pl.pallas_call(
        functools.partial(_epilogue_kernel, HW),
        out_shape=jax.ShapeDtypeStruct((B, O), jnp.float32),
    )(partials,
      w1, b1.reshape(1, -1),
      gamma.reshape(1, -1), beta.reshape(1, -1),
      w2, b2.reshape(1, -1),
      gumbel_noise)


def gate_reference(x, params, gumbel_noise):
    """Pure-JAX reference of the PyTorch forward (training-mode BN, hard gumbel)."""
    w1, b1, gamma, beta, w2, b2 = params
    pooled = jnp.mean(x.astype(jnp.float32), axis=(2, 3))       # (B, C)
    h = pooled @ w1 + b1
    mu = jnp.mean(h, axis=0)
    var = jnp.mean((h - mu) ** 2, axis=0)
    h = (h - mu) / jnp.sqrt(var + BN_EPS) * gamma + beta
    h = jnp.maximum(h, 0.0)
    logits = h @ w2 + b2
    y = (jnp.exp(logits) + gumbel_noise) / TAU
    idx = jnp.argmax(y, axis=-1)
    return jax.nn.one_hot(idx, logits.shape[-1], dtype=jnp.float32)


def init_params(key, in_channel, out_channel):
    """Deterministic init mimicking PyTorch Linear/BatchNorm1d defaults."""
    k1, k2, k3, k4 = jax.random.split(key, 4)
    bound1 = 1.0 / jnp.sqrt(in_channel)
    bound2 = 1.0 / jnp.sqrt(HIDDEN)
    # weights stored pre-transposed: (in, out)
    w1 = jax.random.uniform(k1, (in_channel, HIDDEN), jnp.float32, -bound1, bound1)
    b1 = jax.random.uniform(k2, (HIDDEN,), jnp.float32, -bound1, bound1)
    w2 = jax.random.uniform(k3, (HIDDEN, out_channel), jnp.float32, -bound2, bound2)
    b2 = jax.random.uniform(k4, (out_channel,), jnp.float32, -bound2, bound2)
    gamma = jnp.ones((HIDDEN,), jnp.float32)   # BN weight default
    beta = jnp.zeros((HIDDEN,), jnp.float32)   # BN bias default
    return (w1, b1, gamma, beta, w2, b2)


if __name__ == "__main__":
    B, C, OUT_CHANNEL = 2, 4, 8

    key = jax.random.PRNGKey(0)
    kx1, kx2, kp, kg = jax.random.split(key, 4)

    params = init_params(kp, C, OUT_CHANNEL)
    # TODO(synk): Gumbel noise is sampled host-side (glue); an in-kernel
    # pltpu.prng_* draw would also work but is not part of the module math.
    gumbel_noise = jax.random.gumbel(kg, (B, OUT_CHANNEL), jnp.float32)

    # Case 1: even split across cores (HW=256, tile 128 -> 2 tiles, 2 "cores").
    x1 = jax.random.normal(kx1, (B, C, 16, 16), jnp.float32)
    out1 = jax.block_until_ready(gate_forward(x1, params, gumbel_noise, tile_hw=128))
    assert out1.shape == (B, OUT_CHANNEL)
    assert bool(jnp.all(jnp.sum(out1, axis=-1) == 1.0))         # each row one-hot
    assert bool(jnp.array_equal(out1, gate_reference(x1, params, gumbel_noise)))

    # Case 2: ragged split (HW=324, tile 128 -> 3 tiles): exercises both the
    # remainder mask and the clamped overhang step on core 1.
    x2 = jax.random.normal(kx2, (B, C, 18, 18), jnp.float32)
    out2 = jax.block_until_ready(gate_forward(x2, params, gumbel_noise, tile_hw=128))
    assert bool(jnp.all(jnp.sum(out2, axis=-1) == 1.0))
    assert bool(jnp.array_equal(out2, gate_reference(x2, params, gumbel_noise)))

    print("KERNEL_OK")
</pallas_src>

<mosaic_0001>
module attributes {stable_mosaic.version = 11 : i64} {
  func.func @_pool_kernel(%arg0: i32, %arg1: i32, %arg2: memref<2x4x128xf32, #tpu.memory_space<vmem>>, %arg3: memref<1x2x4xf32, #tpu.memory_space<vmem>>) attributes {dimension_semantics = [#tpu.dimension_semantics<parallel>, #tpu.dimension_semantics<arbitrary>], iteration_bounds = array<i64: 2, 1>, scalar_prefetch = 0 : i64, scratch_operands = 0 : i64, tpu.core_type = #tpu.core_type<tc>, window_params = [{transform_indices = @transform_0, window_bounds = array<i64: 2, 4, 128>}, {transform_indices = @transform_1, window_bounds = array<i64: 1, 2, 4>}]} {
    %c0_i32 = arith.constant 0 : i32
    %0 = arith.cmpi eq, %arg1, %c0_i32 : i32
    %1 = arith.extui %0 : i1 to i32
    %c0_i32_0 = arith.constant 0 : i32
    %2 = arith.cmpi ne, %1, %c0_i32_0 : i32
    scf.if %2 {
      %cst_9 = arith.constant 0.000000e+00 : f32
      %9 = vector.broadcast %cst_9 : f32 to vector<1x2x4xf32>
      %c0_10 = arith.constant 0 : index
      %c0_11 = arith.constant 0 : index
      %c0_12 = arith.constant 0 : index
      %10 = vector.load %arg3[%c0_10, %c0_11, %c0_12] : memref<1x2x4xf32, #tpu.memory_space<vmem>>, vector<1x2x4xf32>
      tpu.vector_store %arg3[%c0_10, %c0_11, %c0_12], %9 {strides = array<i32>} : memref<1x2x4xf32, #tpu.memory_space<vmem>>, vector<1x2x4xf32>,
    } else {
    }
    %c0 = arith.constant 0 : index
    %c0_1 = arith.constant 0 : index
    %c0_2 = arith.constant 0 : index
    %3 = vector.load %arg2[%c0, %c0_1, %c0_2] : memref<2x4x128xf32, #tpu.memory_space<vmem>>, vector<2x4x128xf32>
    %c0_3 = arith.constant 0 : index
    %c0_4 = arith.constant 0 : index
    %c0_5 = arith.constant 0 : index
    %4 = vector.load %arg3[%c0_3, %c0_4, %c0_5] : memref<1x2x4xf32, #tpu.memory_space<vmem>>, vector<1x2x4xf32>
    %cst = arith.constant dense<0.000000e+00> : vector<2x4xf32>
    %5 = vector.multi_reduction <add>, %3, %cst [2] : vector<2x4x128xf32> to vector<2x4xf32>
    %6 = vector.shape_cast %5 : vector<2x4xf32> to vector<1x2x4xf32>
    %7 = arith.addf %4, %6 : vector<1x2x4xf32>
    %c0_6 = arith.constant 0 : index
    %c0_7 = arith.constant 0 : index
    %c0_8 = arith.constant 0 : index
    %8 = vector.load %arg3[%c0_6, %c0_7, %c0_8] : memref<1x2x4xf32, #tpu.memory_space<vmem>>, vector<1x2x4xf32>
    tpu.vector_store %arg3[%c0_6, %c0_7, %c0_8], %7 {strides = array<i32>} : memref<1x2x4xf32, #tpu.memory_space<vmem>>, vector<1x2x4xf32>,
    return
  }
  func.func @transform_0(%arg0: i32, %arg1: i32) -> (i32, i32, i32) {
    %c1_i32 = arith.constant 1 : i32
    %0 = arith.muli %arg0, %c1_i32 : i32
    %1 = arith.addi %0, %arg1 : i32
    %c0_i32 = arith.constant 0 : i32
    %c0_i32_0 = arith.constant 0 : i32
    %c0_i32_1 = arith.constant 0 : i32
    return %c0_i32, %c0_i32_0, %1 : i32, i32, i32
  }
  func.func @transform_1(%arg0: i32, %arg1: i32) -> (i32, i32, i32) {
    %c0_i32 = arith.constant 0 : i32
    %c0_i32_0 = arith.constant 0 : i32
    %c0_i32_1 = arith.constant 0 : i32
    return %arg0, %c0_i32, %c0_i32_0 : i32, i32, i32
  }
}

</mosaic_0001>

<llo_original>
// kernel: tpu_custom_call.1
$region0: #{tpu_custom_call.1}
  #allocation0 [shape = 'u32[]', space=smem, size = 0x4, offset = 0x4, fixed_abs, tag = 'smem constant byte address 0x4 - core index']
  #allocation1 [shape = 'u32[72,128]{1,0:T(1,128)}', space=vmem, size = 0x9000, scoped, tag = 'internal scratch']
  %s0 = inlined_call_operand.hbm [shape: f32[2,4,256], index: 0, kind: input, shape index: {}]
  %s1 = inlined_call_operand.hbm [shape: f32[2,2,4], index: 1, kind: output, shape index: {}]
  %s2 = sld [smem:[#allocation0]]
  $region45: #{tpu_custom_call.1} parent=0
    _
  %s4 = ssub.s32 1, %s2
  %s5 = scalar_select 0, %s4, %s2
  $region1: #{tpu_custom_call.1} parent=0
    #allocation2 [shape = 'u8[8192]{0}', space=vmem, size = 0x2000, scoped, tag = 'input window, operand 0']
    #allocation3 [shape = 's32[2]{0}', space=sflag, size = 0x8, scoped, tag = 'scoped memory for tpu_custom_call.1']
    #allocation4 [shape = 's32[2]{0}', space=sflag, size = 0x8, scoped, tag = 'scoped memory for tpu_custom_call.1']
    #allocation5 [shape = 'u8[2048]{0}', space=vmem, size = 0x800, scoped, tag = 'output window, operand 0']
    %6 = vsyncpa [#allocation3], 0
    %s7 = scalar_lea.sflag [#allocation3], 1
    %8 = vsyncpa %s7, 0
    %9 = vsyncpa [#allocation4], 0
    %s10 = scalar_lea.sflag [#allocation4], 1
    %11 = vsyncpa %s10, 0
    loop: start=0, step=1, limit=4
    $region2: #{tpu_custom_call.1} parent=1 // loop_pre_header
      _
    $region3: #{tpu_custom_call.1} parent=1 // loop_header
      %s13 = sphi 0, %s17
      %p14 = scmp.ge.s32.totalorder %s13, 4
      %s20 = sphi 0, %s32
      %s21 = sphi 0, %s28
      %s22 = sphi 0, %s20
      %s23 = sphi 0, %s21
      %s24 = sphi 0, %s22
      %s25 = sphi 0, %s23
      %s37 = sphi 0, %s39
      %s40 = sphi 0, %s37
      %s41 = sphi 0, %s40
      %s57 = sphi 0, %s41
      %s63 = sphi 0, %s65
      %s66 = sphi 0, %s63
      %s67 = sphi 0, %s66
      %s83 = sphi 0, %s67
    $region4: #{tpu_custom_call.1} parent=1 // loop_header_branch
      %16 = sbr.rel (%p14) target = $region8
    $region5: #{tpu_custom_call.1} parent=1 // loop_body
      %s18 = ssub.s32 %s13, 1
      %s19 = ssub.s32 %s13, 2
      %s26 = sadd.s32 1, %s21
      %p27 = scmp.ge.s32.totalorder %s26, 1
      %s28 = scalar_select %p27, 0, %s26
      %s29 = sadd.s32 1, %s20
      %s30 = scalar_select %p27, %s29, %s20
      %p31 = scmp.ge.s32.totalorder %s30, 2
      %s32 = scalar_select %p31, 0, %s30
      %s33 = sadd.s32 %s20, %s21
      %s34 = sadd.s32 %s32, %s28
      %s35 = ssub.s32 %s33, %s34
      %p36 = scmp.eq.s32.totalorder %s35, 0
      %s38 = sadd.s32 %s37, 1
      %s39 = scalar_select %p36, %s37, %s38
      %p42 = pneg %p36
      %p43 = scmp.eq.s32.totalorder %s13, 1
      %p44 = por %p42, %p43
      %p45 = scmp.ne.s32.totalorder %s37, %s40
      %p46 = scmp.eq.s32.totalorder %s13, 0
      %p47 = por %p45, %p46
      %p48 = scmp.ne.s32.totalorder %s37, %s40
      %p49 = scmp.eq.s32.totalorder %s18, 1
      %p50 = por %p48, %p49
      %p51 = scmp.ne.s32.totalorder %s40, %s41
      %p52 = scmp.eq.s32.totalorder %s18, 0
      %p53 = por %p51, %p52
      %p54 = scmp.ne.s32.totalorder %s40, %s41
      %p55 = scmp.eq.s32.totalorder %s19, 1
      %p56 = por %p54, %p55
      %p58 = scmp.ne.s32.totalorder %s41, %s57
      %p59 = scmp.eq.s32.totalorder %s19, 0
      %p60 = por %p58, %p59
      %s61 = ssub.s32 %s20, %s32
      %p62 = scmp.eq.s32.totalorder %s61, 0
      %s64 = sadd.s32 %s63, 1
      %s65 = scalar_select %p62, %s63, %s64
      %p68 = pneg %p62
      %p69 = scmp.eq.s32.totalorder %s13, 1
      %p70 = por %p68, %p69
      %p71 = scmp.ne.s32.totalorder %s63, %s66
      %p72 = scmp.eq.s32.totalorder %s13, 0
      %p73 = por %p71, %p72
      %p74 = scmp.ne.s32.totalorder %s63, %s66
      %p75 = scmp.eq.s32.totalorder %s18, 1
      %p76 = por %p74, %p75
      %p77 = scmp.ne.s32.totalorder %s66, %s67
      %p78 = scmp.eq.s32.totalorder %s18, 0
      %p79 = por %p77, %p78
      %p80 = scmp.ne.s32.totalorder %s66, %s67
      %p81 = scmp.eq.s32.totalorder %s19, 1
      %p82 = por %p80, %p81
      %p84 = scmp.ne.s32.totalorder %s67, %s83
      %p85 = scmp.eq.s32.totalorder %s19, 0
      %p86 = por %p84, %p85
      %p87 = scmp.le.s32.totalorder 1, %s13
      %p88 = scmp.lt.s32.totalorder %s13, 3
      %p89 = pnand %p87, %p88
      %p90 = pneg %p89
      // Predicated region
      $region9: #{tpu_custom_call.1} parent=5 // pred_check
        _
      $region10: #{tpu_custom_call.1} parent=5 // pred_check_branch
        %92 = sbr.rel (%p89) target = $region12
      $region11: #{tpu_custom_call.1} parent=5 // pred_region
        %s93 = ssub.s32 %s13, 1
      $region12: #{tpu_custom_call.1} parent=5 // pred_fallthru
        _
      %p94 = scmp.lt.s32.totalorder %s13, 2
      // Predicated region
      $region13: #{tpu_custom_call.1} parent=5 // pred_check
        %p95 = pneg %p94
      $region14: #{tpu_custom_call.1} parent=5 // pred_check_branch
        %97 = sbr.rel (%p95) target = $region16
      $region15: #{tpu_custom_call.1} parent=5 // pred_region
        // Predicated region
        $region17: #{tpu_custom_call.1} parent=15 // pred_check
          %p98 = pneg %p47
        $region18: #{tpu_custom_call.1} parent=15 // pred_check_branch
          %100 = sbr.rel (%p98) target = $region20
        $region19: #{tpu_custom_call.1} parent=15 // pred_region
          %s101 = sand.u32 %s37, 1
          %s102 = scalar_lea.sflag [#allocation3], %s101
          %s103 = sand.u32 %s37, 1
          %s104 = smul.addr %s103, 8
          %s105 = scalar_lea.vmem [#allocation2], %s104
          %s106 = sadd.s32 %s20, %s21
          %108 = vsyncadd %s102, 0
          %s109 = smul.addr %s106, 4
          %s110 = scalar_lea.hbm %s0, %s109
          %s111 = sshll.u32 %s110, 4
          %s112 = int_to_ptr.hbm [resolvable:$true] %s111
          %s113 = sshll.u32 %s105, 4
          %s114 = int_to_ptr.vmem [resolvable:$true] %s113
          %119 = dma.hbm_to_vmem [thread:$0]  %s112, 128, %s114, %s102, 128, 64, 4
        $region20: #{tpu_custom_call.1} parent=15 // pred_fallthru
          _
      $region16: #{tpu_custom_call.1} parent=5 // pred_fallthru
        _
      %p120 = scmp.le.s32.totalorder 1, %s13
      %p121 = scmp.lt.s32.totalorder %s13, 3
      %p122 = pnand %p120, %p121
      %p123 = pneg %p122
      // Predicated region
      $region21: #{tpu_custom_call.1} parent=5 // pred_check
        _
      $region22: #{tpu_custom_call.1} parent=5 // pred_check_branch
        %125 = sbr.rel (%p122) target = $region24
      $region23: #{tpu_custom_call.1} parent=5 // pred_region
        %s126 = ssub.s32 %s13, 1
        %s127 = sand.u32 %s40, 1
        %s128 = scalar_lea.sflag [#allocation3], %s127
        %s129 = sand.u32 %s40, 1
        %s130 = smul.addr %s129, 8
        %s131 = scalar_lea.vmem [#allocation2], %s130
        // Predicated region
        $region25: #{tpu_custom_call.1} parent=23 // pred_check
          %p132 = pneg %p53
        $region26: #{tpu_custom_call.1} parent=23 // pred_check_branch
          %134 = sbr.rel (%p132) target = $region28
        $region27: #{tpu_custom_call.1} parent=23 // pred_region
          %136 = dma.done %s128, 128
        $region28: #{tpu_custom_call.1} parent=23 // pred_fallthru
          _
        %s137 = sand.u32 %s40, 1
        %s138 = scalar_lea.sflag [#allocation3], %s137
        %s139 = sand.u32 %s40, 1
        %s140 = smul.addr %s139, 8
        %s141 = scalar_lea.vmem [#allocation2], %s140
        %p142 = pneg %p53
        %p143 = pneg %p50
        %p144 = pneg %p79
        %p145 = pneg %p76
        %s146 = sand.u32 %s66, 1
        %s147 = scalar_lea.sflag [#allocation4], %s146
        %s148 = sand.u32 %s66, 1
        %s149 = smul.addr %s148, 2
        %s150 = scalar_lea.vmem [#allocation5], %s149
        %s151 = sadd.s32 %s22, %s23
        %p152 = scmp.eq.s32.totalorder %s23, 0
        // Predicated region
        $region29: #{tpu_custom_call.1} parent=23 // pred_check
          %p153 = pneg %p152
        $region30: #{tpu_custom_call.1} parent=23 // pred_check_branch
          %155 = sbr.rel (%p153) target = $region32
        $region31: #{tpu_custom_call.1} parent=23 // pred_region
          %vm156 = vcmask 25600
          %157 = vst.msk [vmem:[%s150] sm:$0x3] %vm156, 0.0
        $region32: #{tpu_custom_call.1} parent=23 // pred_fallthru
          _
        %v158 = vld [vmem:[%s131] sm:$0xf]
        %v159 = vld [vmem:[%s131 + $0x4] sm:$0xf]
        %v160 = vld [vmem:[%s150] sm:$0x3]
        %vm161 = vcmask 1043456
        %v162 = vsel %vm161, %v158, 0.0
        %163 = vadd.xlane.f32.xlu0 %v162
        %v164 = vpop.xlane.xlu0 %163
        %v165 = vsel %vm161, %v159, 0.0
        %166 = vadd.xlane.f32.xlu0 %v165
        %v167 = vpop.xlane.xlu0 %166
        %v170 = vlaneseq
        %v171 = vand.u32 %v170, 127
        %v172 = vperm.slane %v164, %v171
        %v173 = vperm.slane %v167, %v171
        %vm174 = vcmask 1041409
        %v175 = vsel %vm174, %v173, %v172
        %v177 = vadd.f32 %v160, %v175
        %vm178 = vcmask 25600
        %179 = vst.msk [vmem:[%s150] sm:$0x3] %vm178, %v177
        %s180 = sand.u32 %s66, 1
        %s181 = scalar_lea.sflag [#allocation4], %s180
        %s182 = sand.u32 %s66, 1
        %s183 = smul.addr %s182, 2
        %s184 = scalar_lea.vmem [#allocation5], %s183
        // Predicated region
        $region33: #{tpu_custom_call.1} parent=23 // pred_check
          %p185 = pneg %p76
        $region34: #{tpu_custom_call.1} parent=23 // pred_check_branch
          %187 = sbr.rel (%p185) target = $region36
        $region35: #{tpu_custom_call.1} parent=23 // pred_region
          %189 = vsyncadd %s181, 0
          %s190 = smul.addr %s22, 2
          %s191 = scalar_lea.hbm %s1, %s190
          %s193 = sshll.u32 %s184, 4
          %s194 = int_to_ptr.vmem [resolvable:$true] %s193
          %s195 = sshll.u32 %s191, 4
          %s196 = int_to_ptr.hbm [resolvable:$true] %s195
          %198 = dma.vmem_to_hbm [thread:$0]  %s194, 32, %s196, %s181
        $region36: #{tpu_custom_call.1} parent=23 // pred_fallthru
          _
      $region24: #{tpu_custom_call.1} parent=5 // pred_fallthru
        _
      %p199 = scmp.le.s32.totalorder 2, %s13
      // Predicated region
      $region37: #{tpu_custom_call.1} parent=5 // pred_check
        %p200 = pneg %p199
      $region38: #{tpu_custom_call.1} parent=5 // pred_check_branch
        %202 = sbr.rel (%p200) target = $region40
      $region39: #{tpu_custom_call.1} parent=5 // pred_region
        %s203 = ssub.s32 %s13, 2
        // Predicated region
        $region41: #{tpu_custom_call.1} parent=39 // pred_check
          %p204 = pneg %p82
        $region42: #{tpu_custom_call.1} parent=39 // pred_check_branch
          %206 = sbr.rel (%p204) target = $region44
        $region43: #{tpu_custom_call.1} parent=39 // pred_region
          %s207 = sand.u32 %s67, 1
          %s208 = scalar_lea.sflag [#allocation4], %s207
          %s209 = sand.u32 %s67, 1
          %s210 = smul.addr %s209, 2
          %s211 = scalar_lea.vmem [#allocation5], %s210
          %213 = dma.done %s208, 32
        $region44: #{tpu_custom_call.1} parent=39 // pred_fallthru
          _
      $region40: #{tpu_custom_call.1} parent=5 // pred_fallthru
        _
    $region6: #{tpu_custom_call.1} parent=1 // loop_footer
      %s17 = sadd.s32 1, %s13
    $region7: #{tpu_custom_call.1} parent=1 // loop_footer_branch
      %12 = sbr.rel target = $region3
    $region8: #{tpu_custom_call.1} parent=1 // loop_exit
      _
    %214 = vsyncpa [#allocation3], 1
    %s215 = scalar_lea.sflag [#allocation3], 1
    %216 = vsyncpa %s215, 1
    %217 = vsyncpa [#allocation4], 1
    %s218 = scalar_lea.sflag [#allocation4], 1
    %219 = vsyncpa %s218, 1

</llo_original>
